<compile_context>
chip_gen: v6e
topology: v6e:2x2x1
jax: 0.10.0
libtpu: 0.0.40
codegen_flags: <defaults>
</compile_context>

<pallas_src>
import jax
import jax.numpy as jnp
from jax.experimental import pallas as pl
from jax.experimental.pallas import tpu as pltpu


def _round_up(x, m):
    return ((x + m - 1) // m) * m


def _choose_tile(batch, cap=2048):
    """Pick the batch tile: large tiles (amortize ~0.35us/step overhead),
    >=2 grid steps when possible (v7x megacore), never larger than the batch."""
    if batch <= 8:
        return batch                      # single block == full array (allowed)
    rows8 = _round_up(batch, 8)
    return min(cap, _round_up(pl.cdiv(rows8, 2), 8))


def dqn_kernel(x_ref, w1_ref, w2_ref, wh_ref, b12_ref, bh_ref,
               cmd_ref, plane_ref):
    # bf16 cast in-kernel (VPU) -> no extra wrapper pad/cast pass over x in HBM.
    x = x_ref[...].astype(w1_ref.dtype)                       # (TB, 120) bf16

    # Hidden layer 1: Linear(120,128) + ReLU  (bias add / ReLU in f32)
    h1 = jnp.dot(x, w1_ref[...], preferred_element_type=jnp.float32) + b12_ref[0:1, :]
    h1 = jnp.maximum(h1, 0.0).astype(x.dtype)

    # Hidden layer 2: Linear(128,128) + ReLU
    h2 = jnp.dot(h1, w2_ref[...], preferred_element_type=jnp.float32) + b12_ref[1:2, :]
    h2 = jnp.maximum(h2, 0.0).astype(x.dtype)

    # Fused heads: one (128, n_commands + n_planes) matmul, split on write.
    logits = jnp.dot(h2, wh_ref[...], preferred_element_type=jnp.float32) + bh_ref[...]
    n_cmd = cmd_ref.shape[-1]
    cmd_ref[...] = logits[:, :n_cmd].astype(cmd_ref.dtype)
    plane_ref[...] = logits[:, n_cmd:].astype(plane_ref.dtype)


def prepare_params(params, compute_dtype=jnp.bfloat16):
    """One-time preprocessing: fuse head weights, pack biases, cast operands.
    Weights are (in_features, out_features); biases (1, out_features)."""
    w1, b1, w2, b2, wc, bc, wp, bp = params
    wh = jnp.concatenate([wc, wp], axis=1)                     # (128, 16)
    bh = jnp.concatenate([bc, bp], axis=1)                     # (1, 16)
    b12 = jnp.concatenate([b1, b2], axis=0)                    # (2, 128)
    return (w1.astype(compute_dtype), w2.astype(compute_dtype),
            wh.astype(compute_dtype),
            b12.astype(jnp.float32), bh.astype(jnp.float32))


def air_traffic_control_dqn(x, prepared, n_commands=6):
    """x: (B, input_dim) float32. Returns (command_logits, plane_logits)."""
    w1, w2, wh, b12, bh = prepared
    B, in_dim = x.shape
    K, H = w1.shape                       # (120, 128)
    assert in_dim == K, f"input_dim {in_dim} != w1 rows {K}"
    n_out = wh.shape[1]                   # n_commands + n_planes
    n_planes = n_out - n_commands

    TB = _choose_tile(B)
    grid = (pl.cdiv(B, TB),)              # partial last block handled by Pallas

    cmd, plane = pl.pallas_call(
        dqn_kernel,
        out_shape=(jax.ShapeDtypeStruct((B, n_commands), jnp.float32),
                   jax.ShapeDtypeStruct((B, n_planes), jnp.float32)),
        grid=grid,
        in_specs=[
            pl.BlockSpec((TB, in_dim), lambda i: (i, 0)),   # x: streamed over batch
            pl.BlockSpec((K, H), lambda i: (0, 0)),         # weights: VMEM-resident
            pl.BlockSpec((H, H), lambda i: (0, 0)),
            pl.BlockSpec((H, n_out), lambda i: (0, 0)),
            pl.BlockSpec((2, H), lambda i: (0, 0)),
            pl.BlockSpec((1, n_out), lambda i: (0, 0)),
        ],
        out_specs=(pl.BlockSpec((TB, n_commands), lambda i: (i, 0)),
                   pl.BlockSpec((TB, n_planes), lambda i: (i, 0))),
        compiler_params=pltpu.CompilerParams(
            # On v7x, consider pltpu.CORE_PARALLEL / pl.core_map for a
            # guaranteed two-TensorCore split of the batch axis.
            dimension_semantics=("parallel",)),
    )(x, w1, w2, wh, b12, bh)

    return cmd, plane


def init_params(key, input_dim=120, hidden=128, n_commands=6, n_planes=10):
    """Deterministic synthetic parameters (not a checkpoint load).
    NOTE: PyTorch Linear checkpoints store (out,in) weights / (out,) biases;
    a real port must transpose/reshape before calling prepare_params."""
    ks = jax.random.split(key, 8)
    scale = 0.05
    w1 = scale * jax.random.normal(ks[0], (input_dim, hidden), jnp.float32)
    b1 = scale * jax.random.normal(ks[1], (1, hidden), jnp.float32)
    w2 = scale * jax.random.normal(ks[2], (hidden, hidden), jnp.float32)
    b2 = scale * jax.random.normal(ks[3], (1, hidden), jnp.float32)
    wc = scale * jax.random.normal(ks[4], (hidden, n_commands), jnp.float32)
    bc = scale * jax.random.normal(ks[5], (1, n_commands), jnp.float32)
    wp = scale * jax.random.normal(ks[6], (hidden, n_planes), jnp.float32)
    bp = scale * jax.random.normal(ks[7], (1, n_planes), jnp.float32)
    return (w1, b1, w2, b2, wc, bc, wp, bp)


def reference_forward_f32(x, params):
    """Pure-JAX f32 reference mirroring the PyTorch module exactly."""
    w1, b1, w2, b2, wc, bc, wp, bp = params
    h = jnp.maximum(x @ w1 + b1, 0.0)
    h = jnp.maximum(h @ w2 + b2, 0.0)
    return h @ wc + bc, h @ wp + bp


def reference_forward_like_kernel(x, params, compute_dtype=jnp.bfloat16):
    """Pure-JAX reference with the same bf16-operand / f32-accumulate numerics."""
    w1, b1, w2, b2, wc, bc, wp, bp = params
    xb = x.astype(compute_dtype)
    h = jnp.dot(xb, w1.astype(compute_dtype), preferred_element_type=jnp.float32) + b1
    h = jnp.maximum(h, 0.0).astype(compute_dtype)
    h = jnp.dot(h, w2.astype(compute_dtype), preferred_element_type=jnp.float32) + b2
    h = jnp.maximum(h, 0.0).astype(compute_dtype)
    cmd = jnp.dot(h, wc.astype(compute_dtype), preferred_element_type=jnp.float32) + bc
    pln = jnp.dot(h, wp.astype(compute_dtype), preferred_element_type=jnp.float32) + bp
    return cmd, pln


if __name__ == "__main__":
    key = jax.random.PRNGKey(0)
    k_x, k_x2, k_p = jax.random.split(key, 3)

    input_dim, n_commands, n_planes = 120, 6, 10
    params = init_params(k_p, input_dim=input_dim,
                         n_commands=n_commands, n_planes=n_planes)
    prepared = prepare_params(params)

    fwd = jax.jit(lambda xx: air_traffic_control_dqn(xx, prepared,
                                                     n_commands=n_commands))

    # Small-batch case (single partial block).
    B = 2
    x = jax.random.normal(k_x, (B, input_dim), jnp.float32)
    cmd_logits, plane_logits = fwd(x)
    jax.block_until_ready((cmd_logits, plane_logits))
    assert cmd_logits.shape == (B, n_commands)
    assert plane_logits.shape == (B, n_planes)

    ref_cmd_k, ref_plane_k = reference_forward_like_kernel(x, params)
    assert jnp.allclose(cmd_logits, ref_cmd_k, atol=2e-3, rtol=2e-3)
    assert jnp.allclose(plane_logits, ref_plane_k, atol=2e-3, rtol=2e-3)

    ref_cmd, ref_plane = reference_forward_f32(x, params)
    assert jnp.allclose(cmd_logits, ref_cmd, atol=5e-2, rtol=5e-2)
    assert jnp.allclose(plane_logits, ref_plane, atol=5e-2, rtol=5e-2)

    # Multi-tile case (grid > 1, non-dividing batch -> partial last block).
    B2 = 33
    x2 = jax.random.normal(k_x2, (B2, input_dim), jnp.float32)
    cmd2, plane2 = fwd(x2)
    jax.block_until_ready((cmd2, plane2))
    assert cmd2.shape == (B2, n_commands) and plane2.shape == (B2, n_planes)
    ref_cmd2, ref_plane2 = reference_forward_like_kernel(x2, params)
    assert jnp.allclose(cmd2, ref_cmd2, atol=2e-3, rtol=2e-3)
    assert jnp.allclose(plane2, ref_plane2, atol=2e-3, rtol=2e-3)

    print("KERNEL_OK")
</pallas_src>

<mosaic_0001>
module attributes {stable_mosaic.version = 11 : i64} {
  func.func @dqn_kernel(%arg0: i32, %arg1: memref<2x120xf32, #tpu.memory_space<vmem>>, %arg2: memref<120x128xbf16, #tpu.memory_space<vmem>>, %arg3: memref<128x128xbf16, #tpu.memory_space<vmem>>, %arg4: memref<128x16xbf16, #tpu.memory_space<vmem>>, %arg5: memref<2x128xf32, #tpu.memory_space<vmem>>, %arg6: memref<1x16xf32, #tpu.memory_space<vmem>>, %arg7: memref<2x6xf32, #tpu.memory_space<vmem>>, %arg8: memref<2x10xf32, #tpu.memory_space<vmem>>) attributes {dimension_semantics = [#tpu.dimension_semantics<parallel>], iteration_bounds = array<i64: 1>, scalar_prefetch = 0 : i64, scratch_operands = 0 : i64, tpu.core_type = #tpu.core_type<tc>, window_params = [{transform_indices = @transform_0, window_bounds = array<i64: 2, 120>}, {pipeline_mode = #tpu.pipeline_mode<synchronous>, transform_indices = @transform_1, window_bounds = array<i64: 120, 128>}, {pipeline_mode = #tpu.pipeline_mode<synchronous>, transform_indices = @transform_2, window_bounds = array<i64: 128, 128>}, {pipeline_mode = #tpu.pipeline_mode<synchronous>, transform_indices = @transform_3, window_bounds = array<i64: 128, 16>}, {pipeline_mode = #tpu.pipeline_mode<synchronous>, transform_indices = @transform_4, window_bounds = array<i64: 2, 128>}, {pipeline_mode = #tpu.pipeline_mode<synchronous>, transform_indices = @transform_5, window_bounds = array<i64: 1, 16>}, {transform_indices = @transform_6, window_bounds = array<i64: 2, 6>}, {transform_indices = @transform_7, window_bounds = array<i64: 2, 10>}]} {
    %c0 = arith.constant 0 : index
    %c0_0 = arith.constant 0 : index
    %0 = vector.load %arg1[%c0, %c0_0] : memref<2x120xf32, #tpu.memory_space<vmem>>, vector<2x120xf32>
    %1 = arith.truncf %0 : vector<2x120xf32> to vector<2x120xbf16>
    %c0_1 = arith.constant 0 : index
    %c0_2 = arith.constant 0 : index
    %2 = vector.load %arg2[%c0_1, %c0_2] : memref<120x128xbf16, #tpu.memory_space<vmem>>, vector<120x128xbf16>
    %cst = arith.constant dense<0.000000e+00> : vector<2x128xf32>
    %3 = tpu.matmul %1, %2, %cst {dimension_numbers = #tpu.dot_dimension_numbers<[1], [0], [0], [1], [0, 0, 1, 1], [], []>} : vector<2x120xbf16>, vector<120x128xbf16>, vector<2x128xf32> -> vector<2x128xf32>
    %c0_3 = arith.constant 0 : index
    %c0_4 = arith.constant 0 : index
    %4 = vector.load %arg5[%c0_3, %c0_4] : memref<2x128xf32, #tpu.memory_space<vmem>>, vector<1x128xf32>
    %5 = vector.broadcast %4 : vector<1x128xf32> to vector<2x128xf32>
    %6 = arith.addf %3, %5 : vector<2x128xf32>
    %cst_5 = arith.constant 0.000000e+00 : f32
    %7 = vector.broadcast %cst_5 : f32 to vector<2x128xf32>
    %8 = arith.maximumf %6, %7 : vector<2x128xf32>
    %9 = arith.truncf %8 : vector<2x128xf32> to vector<2x128xbf16>
    %c0_6 = arith.constant 0 : index
    %c0_7 = arith.constant 0 : index
    %10 = vector.load %arg3[%c0_6, %c0_7] : memref<128x128xbf16, #tpu.memory_space<vmem>>, vector<128x128xbf16>
    %cst_8 = arith.constant dense<0.000000e+00> : vector<2x128xf32>
    %11 = tpu.matmul %9, %10, %cst_8 {dimension_numbers = #tpu.dot_dimension_numbers<[1], [0], [0], [1], [0, 0, 1, 1], [], []>} : vector<2x128xbf16>, vector<128x128xbf16>, vector<2x128xf32> -> vector<2x128xf32>
    %c1 = arith.constant 1 : index
    %c0_9 = arith.constant 0 : index
    %12 = vector.load %arg5[%c1, %c0_9] : memref<2x128xf32, #tpu.memory_space<vmem>>, vector<1x128xf32>
    %13 = vector.broadcast %12 : vector<1x128xf32> to vector<2x128xf32>
    %14 = arith.addf %11, %13 : vector<2x128xf32>
    %cst_10 = arith.constant 0.000000e+00 : f32
    %15 = vector.broadcast %cst_10 : f32 to vector<2x128xf32>
    %16 = arith.maximumf %14, %15 : vector<2x128xf32>
    %17 = arith.truncf %16 : vector<2x128xf32> to vector<2x128xbf16>
    %c0_11 = arith.constant 0 : index
    %c0_12 = arith.constant 0 : index
    %18 = vector.load %arg4[%c0_11, %c0_12] : memref<128x16xbf16, #tpu.memory_space<vmem>>, vector<128x16xbf16>
    %cst_13 = arith.constant dense<0.000000e+00> : vector<2x16xf32>
    %19 = tpu.matmul %17, %18, %cst_13 {dimension_numbers = #tpu.dot_dimension_numbers<[1], [0], [0], [1], [0, 0, 1, 1], [], []>} : vector<2x128xbf16>, vector<128x16xbf16>, vector<2x16xf32> -> vector<2x16xf32>
    %c0_14 = arith.constant 0 : index
    %c0_15 = arith.constant 0 : index
    %20 = vector.load %arg6[%c0_14, %c0_15] : memref<1x16xf32, #tpu.memory_space<vmem>>, vector<1x16xf32>
    %21 = vector.broadcast %20 : vector<1x16xf32> to vector<2x16xf32>
    %22 = arith.addf %19, %21 : vector<2x16xf32>
    %23 = vector.extract_strided_slice %22 {offsets = [0, 0], sizes = [2, 6], strides = [1, 1]} : vector<2x16xf32> to vector<2x6xf32>
    %c0_16 = arith.constant 0 : index
    %c0_17 = arith.constant 0 : index
    %24 = vector.load %arg7[%c0_16, %c0_17] : memref<2x6xf32, #tpu.memory_space<vmem>>, vector<2x6xf32>
    tpu.vector_store %arg7[%c0_16, %c0_17], %23 {strides = array<i32>} : memref<2x6xf32, #tpu.memory_space<vmem>>, vector<2x6xf32>,
    %25 = vector.extract_strided_slice %22 {offsets = [0, 6], sizes = [2, 10], strides = [1, 1]} : vector<2x16xf32> to vector<2x10xf32>
    %c0_18 = arith.constant 0 : index
    %c0_19 = arith.constant 0 : index
    %26 = vector.load %arg8[%c0_18, %c0_19] : memref<2x10xf32, #tpu.memory_space<vmem>>, vector<2x10xf32>
    tpu.vector_store %arg8[%c0_18, %c0_19], %25 {strides = array<i32>} : memref<2x10xf32, #tpu.memory_space<vmem>>, vector<2x10xf32>,
    return
  }
  func.func @transform_0(%arg0: i32) -> (i32, i32) {
    %c0_i32 = arith.constant 0 : i32
    %c0_i32_0 = arith.constant 0 : i32
    return %arg0, %c0_i32 : i32, i32
  }
  func.func @transform_1(%arg0: i32) -> (i32, i32) {
    %c0_i32 = arith.constant 0 : i32
    %c0_i32_0 = arith.constant 0 : i32
    %c0_i32_1 = arith.constant 0 : i32
    return %c0_i32, %c0_i32_0 : i32, i32
  }
  func.func @transform_2(%arg0: i32) -> (i32, i32) {
    %c0_i32 = arith.constant 0 : i32
    %c0_i32_0 = arith.constant 0 : i32
    %c0_i32_1 = arith.constant 0 : i32
    return %c0_i32, %c0_i32_0 : i32, i32
  }
  func.func @transform_3(%arg0: i32) -> (i32, i32) {
    %c0_i32 = arith.constant 0 : i32
    %c0_i32_0 = arith.constant 0 : i32
    %c0_i32_1 = arith.constant 0 : i32
    return %c0_i32, %c0_i32_0 : i32, i32
  }
  func.func @transform_4(%arg0: i32) -> (i32, i32) {
    %c0_i32 = arith.constant 0 : i32
    %c0_i32_0 = arith.constant 0 : i32
    %c0_i32_1 = arith.constant 0 : i32
    return %c0_i32, %c0_i32_0 : i32, i32
  }
  func.func @transform_5(%arg0: i32) -> (i32, i32) {
    %c0_i32 = arith.constant 0 : i32
    %c0_i32_0 = arith.constant 0 : i32
    %c0_i32_1 = arith.constant 0 : i32
    return %c0_i32, %c0_i32_0 : i32, i32
  }
  func.func @transform_6(%arg0: i32) -> (i32, i32) {
    %c0_i32 = arith.constant 0 : i32
    %c0_i32_0 = arith.constant 0 : i32
    return %arg0, %c0_i32 : i32, i32
  }
  func.func @transform_7(%arg0: i32) -> (i32, i32) {
    %c0_i32 = arith.constant 0 : i32
    %c0_i32_0 = arith.constant 0 : i32
    return %arg0, %c0_i32 : i32, i32
  }
}

</mosaic_0001>

<llo_original>
// kernel: _lambda_.1
$region0: #{_lambda_.1}
  #allocation0 [shape = 'u32[]', space=smem, size = 0x4, offset = 0x4, fixed_abs, tag = 'smem constant byte address 0x4 - core index']
  #allocation1 [shape = 'u32[144,128]{1,0:T(1,128)}', space=vmem, size = 0x12000, scoped, tag = 'internal scratch']
  %s0 = inlined_call_operand.hbm [shape: f32[2,120], index: 0, kind: input, shape index: {}]
  %s1 = inlined_call_operand.hbm [shape: bf16[120,128], index: 1, kind: input, shape index: {}]
  %s2 = inlined_call_operand.hbm [shape: bf16[128,128], index: 2, kind: input, shape index: {}]
  %s3 = inlined_call_operand.hbm [shape: bf16[128,16], index: 3, kind: input, shape index: {}]
  %s4 = inlined_call_operand.vmem [shape: f32[2,128], index: 4, kind: input, shape index: {}]
  %s5 = inlined_call_operand.vmem [shape: f32[1,16], index: 5, kind: input, shape index: {}]
  %s6 = inlined_call_operand.hbm [shape: f32[2,6], index: 6, kind: output, shape index: {0}]
  %s7 = inlined_call_operand.hbm [shape: f32[2,10], index: 7, kind: output, shape index: {1}]
  %8 = xla_tuple %s6, %s7
  %s9 = sld [smem:[#allocation0]]
  $region58: #{_lambda_.1} parent=0
    _
  %s11 = ssub.s32 1, %s9
  %s12 = scalar_select 0, %s11, %s9
  $region1: #{_lambda_.1} parent=0
    #allocation2 [shape = 'u8[1024]{0}', space=vmem, size = 0x400, scoped, tag = 'input window, operand 0, single buffered']
    #allocation3 [shape = 's32[1]{0}', space=sflag, size = 0x4, scoped, tag = 'scoped memory for _lambda_.1']
    #allocation4 [shape = 's32[1]{0}', space=sflag, size = 0x4, scoped, tag = 'scoped memory for _lambda_.1']
    #allocation5 [shape = 'u8[30720]{0}', space=vmem, size = 0x7800, scoped, tag = 'input window, operand 1, single buffered']
    #allocation6 [shape = 's32[1]{0}', space=sflag, size = 0x4, scoped, tag = 'scoped memory for _lambda_.1']
    #allocation7 [shape = 'u8[32768]{0}', space=vmem, size = 0x8000, scoped, tag = 'input window, operand 2, single buffered']
    #allocation8 [shape = 'u8[32768]{0}', space=vmem, size = 0x8000, scoped, tag = 'input window, operand 3, single buffered']
    #allocation9 [shape = 's32[1]{0}', space=sflag, size = 0x4, scoped, tag = 'scoped memory for _lambda_.1']
    #allocation10 [shape = 'u8[1024]{0}', space=vmem, size = 0x400, scoped, tag = 'output window, operand 0, single buffered']
    #allocation11 [shape = 'u8[1024]{0}', space=vmem, size = 0x400, scoped, tag = 'output window, operand 1, single buffered']
    #allocation12 [shape = 's32[1]{0}', space=sflag, size = 0x4, scoped, tag = 'scoped memory for _lambda_.1']
    %13 = vsyncpa [#allocation3], 0
    %14 = vsyncpa [#allocation6], 0
    %15 = vsyncpa [#allocation9], 0
    %16 = vsyncpa [#allocation4], 0
    %17 = vsyncpa [#allocation12], 0
    // Predicated region
    $region2: #{_lambda_.1} parent=1 // pred_check
      _
    $region3: #{_lambda_.1} parent=1 // pred_check_branch
      %19 = sbr.rel (0) target = $region5
    $region4: #{_lambda_.1} parent=1 // pred_region
      %s21 = ssub.s32 32, 32
      %22 = vsyncadd [#allocation3], %s21
      %s24 = sshll.u32 [#allocation2], 4
      %s25 = int_to_ptr.vmem [resolvable:$true] %s24
      %27 = dma.hbm_to_vmem [thread:$0]  %s0, 32, %s25, [#allocation3]
    $region5: #{_lambda_.1} parent=1 // pred_fallthru
      _
    // Predicated region
    $region6: #{_lambda_.1} parent=1 // pred_check
      _
    $region7: #{_lambda_.1} parent=1 // pred_check_branch
      %29 = sbr.rel (0) target = $region9
    $region8: #{_lambda_.1} parent=1 // pred_region
      %s31 = ssub.s32 960, 960
      %32 = vsyncadd [#allocation6], %s31
      %s33 = sshll.u32 [#allocation5], 4
      %s34 = int_to_ptr.vmem [resolvable:$true] %s33
      %39 = dma.hbm_to_vmem [thread:$0]  %s1, 960, %s34, [#allocation6], 64, 64, 4
    $region9: #{_lambda_.1} parent=1 // pred_fallthru
      _
    // Predicated region
    $region10: #{_lambda_.1} parent=1 // pred_check
      _
    $region11: #{_lambda_.1} parent=1 // pred_check_branch
      %41 = sbr.rel (0) target = $region13
    $region12: #{_lambda_.1} parent=1 // pred_region
      %s43 = ssub.s32 1024, 1024
      %44 = vsyncadd [#allocation6], %s43
      %s45 = sshll.u32 [#allocation7], 4
      %s46 = int_to_ptr.vmem [resolvable:$true] %s45
      %51 = dma.hbm_to_vmem [thread:$0]  %s2, 1024, %s46, [#allocation6], 64, 64, 4
    $region13: #{_lambda_.1} parent=1 // pred_fallthru
      _
    // Predicated region
    $region14: #{_lambda_.1} parent=1 // pred_check
      _
    $region15: #{_lambda_.1} parent=1 // pred_check_branch
      %53 = sbr.rel (0) target = $region17
    $region16: #{_lambda_.1} parent=1 // pred_region
      %s55 = ssub.s32 1024, 1024
      %56 = vsyncadd [#allocation9], %s55
      %s57 = sshll.u32 [#allocation8], 4
      %s58 = int_to_ptr.vmem [resolvable:$true] %s57
      %63 = dma.hbm_to_vmem [thread:$0]  %s3, 1024, %s58, [#allocation9], 64, 64, 4
    $region17: #{_lambda_.1} parent=1 // pred_fallthru
      _
    // Predicated region
    $region18: #{_lambda_.1} parent=1 // pred_check
      _
    $region19: #{_lambda_.1} parent=1 // pred_check_branch
      %65 = sbr.rel (0) target = $region21
    $region20: #{_lambda_.1} parent=1 // pred_region
      _
    $region21: #{_lambda_.1} parent=1 // pred_fallthru
      _
    // Predicated region
    $region22: #{_lambda_.1} parent=1 // pred_check
      _
    $region23: #{_lambda_.1} parent=1 // pred_check_branch
      %67 = sbr.rel (0) target = $region25
    $region24: #{_lambda_.1} parent=1 // pred_region
      _
    $region25: #{_lambda_.1} parent=1 // pred_fallthru
      _
    // Predicated region
    $region26: #{_lambda_.1} parent=1 // pred_check
      _
    $region27: #{_lambda_.1} parent=1 // pred_check_branch
      %69 = sbr.rel (0) target = $region29
    $region28: #{_lambda_.1} parent=1 // pred_region
      %70 = dma.done [#allocation3], 32
    $region29: #{_lambda_.1} parent=1 // pred_fallthru
      _
    // Predicated region
    $region30: #{_lambda_.1} parent=1 // pred_check
      _
    $region31: #{_lambda_.1} parent=1 // pred_check_branch
      %72 = sbr.rel (0) target = $region33
    $region32: #{_lambda_.1} parent=1 // pred_region
      %73 = dma.done [#allocation6], 960
    $region33: #{_lambda_.1} parent=1 // pred_fallthru
      _
    // Predicated region
    $region34: #{_lambda_.1} parent=1 // pred_check
      _
    $region35: #{_lambda_.1} parent=1 // pred_check_branch
      %75 = sbr.rel (0) target = $region37
    $region36: #{_lambda_.1} parent=1 // pred_region
      %76 = dma.done [#allocation6], 1024
    $region37: #{_lambda_.1} parent=1 // pred_fallthru
      _
    // Predicated region
    $region38: #{_lambda_.1} parent=1 // pred_check
      _
    $region39: #{_lambda_.1} parent=1 // pred_check_branch
      %78 = sbr.rel (0) target = $region41
    $region40: #{_lambda_.1} parent=1 // pred_region
      %79 = dma.done [#allocation9], 1024
    $region41: #{_lambda_.1} parent=1 // pred_fallthru
      _
    %v81 = vld [vmem:[#allocation2] sm:$0x3]
    %v82 = vpack.c.bf16 %v81, %v81
    %v83 = vld [vmem:[#allocation5] sm:$0xf]
    %v84 = vld [vmem:[#allocation5 + $0x4] sm:$0xf]
    %v85 = vld [vmem:[#allocation5 + $0x8] sm:$0xf]
    %v86 = vld [vmem:[#allocation5 + $0xc] sm:$0xf]
    %v87 = vld [vmem:[#allocation5 + $0x10] sm:$0xf]
    %v88 = vld [vmem:[#allocation5 + $0x14] sm:$0xf]
    %v89 = vld [vmem:[#allocation5 + $0x18] sm:$0xf]
    %v90 = vld [vmem:[#allocation5 + $0x1c] sm:$0xf]
    %v91 = vld [vmem:[#allocation5 + $0x20] sm:$0xf]
    %v92 = vld [vmem:[#allocation5 + $0x24] sm:$0xf]
    %v93 = vld [vmem:[#allocation5 + $0x28] sm:$0xf]
    %v94 = vld [vmem:[#allocation5 + $0x2c] sm:$0xf]
    %v95 = vld [vmem:[#allocation5 + $0x30] sm:$0xf]
    %v96 = vld [vmem:[#allocation5 + $0x34] sm:$0xf]
    %v97 = vld [vmem:[#allocation5 + $0x38] sm:$0xf]
    %v98 = vld [vmem:[%s4] sm:$0x1]
    %v99 = vlaneseq
    %v100 = vshrl.u32 %v99, 7
    %v101 = vsub.s32 0, %v100
    %v102 = vrot.slane %v98, %v101
    %v118 = vunpack.c.l.b16 %v83
    %v119 = vunpack.c.l.b16 %v84
    %v120 = vunpack.c.l.b16 %v85
    %v121 = vunpack.c.l.b16 %v86
    %v122 = vunpack.c.l.b16 %v87
    %v123 = vunpack.c.l.b16 %v88
    %v124 = vunpack.c.l.b16 %v89
    %v125 = vunpack.c.l.b16 %v90
    %v126 = vunpack.c.l.b16 %v91
    %v127 = vunpack.c.l.b16 %v92
    %v128 = vunpack.c.l.b16 %v93
    %v129 = vunpack.c.l.b16 %v94
    %v130 = vunpack.c.l.b16 %v95
    %v131 = vunpack.c.l.b16 %v96
    %v132 = vunpack.c.l.b16 %v97
    %v133 = vpack.c.b16 %v119, %v118
    %v134 = vpack.c.b16 %v121, %v120
    %v135 = vpack.c.b16 %v123, %v122
    %v136 = vpack.c.b16 %v125, %v124
    %v137 = vpack.c.b16 %v127, %v126
    %v138 = vpack.c.b16 %v129, %v128
    %v139 = vpack.c.b16 %v131, %v130
    %v140 = vpack.c.b16 %v132, %v132
    %vm148 = vcmask 982016
    %v150 = vsel %vm148, %v82, 0
    %vm152 = vcmask 1043456
    %v154 = vsel %vm152, %v140, 0
    %156 = vmatprep.subr.bf16.mxu0 0
    %157 = vmatpush1.bf16.msra.mxu0 %v154
    %158 = vmatprep.subr.bf16.mxu0 0
    %159 = vmatpush1.bf16.msra.mxu0 %v139
    %160 = vmatprep.subr.bf16.mxu0 0
    %161 = vmatpush1.bf16.msra.mxu0 %v138
    %162 = vmatprep.subr.bf16.mxu0 0
    %163 = vmatpush1.bf16.msra.mxu0 %v137
    %164 = vmatprep.subr.bf16.mxu0 0
    %165 = vmatpush1.bf16.msra.mxu0 %v136
    %166 = vmatprep.subr.bf16.mxu0 0
    %167 = vmatpush1.bf16.msra.mxu0 %v135
    %168 = vmatprep.subr.bf16.mxu0 0
    %169 = vmatpush1.bf16.msra.mxu0 %v134
    %170 = vmatprep.subr.bf16.mxu0 0
    %171 = vmatpush1.bf16.msra.mxu0 %v133
    %172 = vmatprep.subr.bf16.mxu0 0
    %173 = vmatpush2.bf16.msra.mxu0 0
    %174 = vmatprep.subr.bf16.mxu0 0
    %175 = vmatpush2.bf16.msra.mxu0 0
    %176 = vmatprep.subr.bf16.mxu0 0
    %177 = vmatpush2.bf16.msra.mxu0 0
    %178 = vmatprep.subr.bf16.mxu0 0
    %179 = vmatpush2.bf16.msra.mxu0 0
    %180 = vmatprep.subr.bf16.mxu0 0
    %181 = vmatpush2.bf16.msra.mxu0 0
    %182 = vmatprep.subr.bf16.mxu0 0
    %183 = vmatpush2.bf16.msra.mxu0 0
    %184 = vmatprep.subr.bf16.mxu0 0
    %185 = vmatpush2.bf16.msra.mxu0 0
    %186 = vmatprep.subr.bf16.mxu0 0
    %187 = vmatpush2.bf16.msra.mxu0 0
    %188 = vmatprep.mubr.bf16.mxu0 0
    %189 = vmatmul.mubr.bf16.gmra.mxu0 %v150
    %v190 = vpop.f32.mrf.mxu0
    %v191 = vadd.f32 %v102, %v190
    %v192 = vpop.f32.mrf.mxu0
    %v193 = vpop.f32.mrf.mxu0
    %v194 = vpop.f32.mrf.mxu0
    %195 = vdwg.mxu0
    %v196 = vmax.f32 %v191, 0.0
    %v197 = vpack.c.bf16 %v196, %v196
    %v198 = vld [vmem:[#allocation7] sm:$0xf]
    %v199 = vld [vmem:[#allocation7 + $0x4] sm:$0xf]
    %v200 = vld [vmem:[#allocation7 + $0x8] sm:$0xf]
    %v201 = vld [vmem:[#allocation7 + $0xc] sm:$0xf]
    %v202 = vld [vmem:[#allocation7 + $0x10] sm:$0xf]
    %v203 = vld [vmem:[#allocation7 + $0x14] sm:$0xf]
    %v204 = vld [vmem:[#allocation7 + $0x18] sm:$0xf]
    %v205 = vld [vmem:[#allocation7 + $0x1c] sm:$0xf]
    %v206 = vld [vmem:[#allocation7 + $0x20] sm:$0xf]
    %v207 = vld [vmem:[#allocation7 + $0x24] sm:$0xf]
    %v208 = vld [vmem:[#allocation7 + $0x28] sm:$0xf]
    %v209 = vld [vmem:[#allocation7 + $0x2c] sm:$0xf]
    %v210 = vld [vmem:[#allocation7 + $0x30] sm:$0xf]
    %v211 = vld [vmem:[#allocation7 + $0x34] sm:$0xf]
    %v212 = vld [vmem:[#allocation7 + $0x38] sm:$0xf]
    %v213 = vld [vmem:[#allocation7 + $0x3c] sm:$0xf]
    %v214 = vld [vmem:[%s4 + $0x1] sm:$0x1]
    %v215 = vlaneseq
    %v216 = vshrl.u32 %v215, 7
    %v217 = vsub.s32 0, %v216
    %v218 = vrot.slane %v214, %v217
    %v235 = vunpack.c.l.b16 %v198
    %v236 = vunpack.c.l.b16 %v199
    %v237 = vunpack.c.l.b16 %v200
    %v238 = vunpack.c.l.b16 %v201
    %v239 = vunpack.c.l.b16 %v202
    %v240 = vunpack.c.l.b16 %v203
    %v241 = vunpack.c.l.b16 %v204
    %v242 = vunpack.c.l.b16 %v205
    %v243 = vunpack.c.l.b16 %v206
    %v244 = vunpack.c.l.b16 %v207
    %v245 = vunpack.c.l.b16 %v208
    %v246 = vunpack.c.l.b16 %v209
    %v247 = vunpack.c.l.b16 %v210
    %v248 = vunpack.c.l.b16 %v211
    %v249 = vunpack.c.l.b16 %v212
    %v250 = vunpack.c.l.b16 %v213
    %v251 = vpack.c.b16 %v236, %v235
    %v252 = vpack.c.b16 %v238, %v237
    %v253 = vpack.c.b16 %v240, %v239
    %v254 = vpack.c.b16 %v242, %v241
    %v255 = vpack.c.b16 %v244, %v243
    %v256 = vpack.c.b16 %v246, %v245
    %v257 = vpack.c.b16 %v248, %v247
    %v258 = vpack.c.b16 %v250, %v249
    %267 = vmatprep.subr.bf16.mxu0 0
    %268 = vmatpush1.bf16.msra.mxu0 %v258
    %269 = vmatprep.subr.bf16.mxu0 0
    %270 = vmatpush1.bf16.msra.mxu0 %v257
    %271 = vmatprep.subr.bf16.mxu0 0
    %272 = vmatpush1.bf16.msra.mxu0 %v256
    %273 = vmatprep.subr.bf16.mxu0 0
    %274 = vmatpush1.bf16.msra.mxu0 %v255
    %275 = vmatprep.subr.bf16.mxu0 0
    %276 = vmatpush1.bf16.msra.mxu0 %v254
    %277 = vmatprep.subr.bf16.mxu0 0
    %278 = vmatpush1.bf16.msra.mxu0 %v253
    %279 = vmatprep.subr.bf16.mxu0 0
    %280 = vmatpush1.bf16.msra.mxu0 %v252
    %281 = vmatprep.subr.bf16.mxu0 0
    %282 = vmatpush1.bf16.msra.mxu0 %v251
    %283 = vmatprep.subr.bf16.mxu0 0
    %284 = vmatpush2.bf16.msra.mxu0 0
    %285 = vmatprep.subr.bf16.mxu0 0
    %286 = vmatpush2.bf16.msra.mxu0 0
    %287 = vmatprep.subr.bf16.mxu0 0
    %288 = vmatpush2.bf16.msra.mxu0 0
    %289 = vmatprep.subr.bf16.mxu0 0
    %290 = vmatpush2.bf16.msra.mxu0 0
    %291 = vmatprep.subr.bf16.mxu0 0
    %292 = vmatpush2.bf16.msra.mxu0 0
    %293 = vmatprep.subr.bf16.mxu0 0
    %294 = vmatpush2.bf16.msra.mxu0 0
    %295 = vmatprep.subr.bf16.mxu0 0
    %296 = vmatpush2.bf16.msra.mxu0 0
    %297 = vmatprep.subr.bf16.mxu0 0
    %298 = vmatpush2.bf16.msra.mxu0 0
    %299 = vmatprep.mubr.bf16.mxu0 0
    %300 = vmatmul.mubr.bf16.gmra.mxu0 %v197
    %v301 = vpop.f32.mrf.mxu0
    %v302 = vadd.f32 %v218, %v301
    %v303 = vpop.f32.mrf.mxu0
    %v304 = vpop.f32.mrf.mxu0
    %v305 = vpop.f32.mrf.mxu0
    %306 = vdwg.mxu0
    %v307 = vmax.f32 %v302, 0.0
    %v308 = vpack.c.bf16 %v307, %v307
    %v309 = vld [vmem:[#allocation8] sm:$0xf]
    %v310 = vld [vmem:[#allocation8 + $0x4] sm:$0xf]
    %v311 = vld [vmem:[#allocation8 + $0x8] sm:$0xf]
    %v312 = vld [vmem:[#allocation8 + $0xc] sm:$0xf]
    %v313 = vld [vmem:[#allocation8 + $0x10] sm:$0xf]
    %v314 = vld [vmem:[#allocation8 + $0x14] sm:$0xf]
    %v315 = vld [vmem:[#allocation8 + $0x18] sm:$0xf]
    %v316 = vld [vmem:[#allocation8 + $0x1c] sm:$0xf]
    %v317 = vld [vmem:[#allocation8 + $0x20] sm:$0xf]
    %v318 = vld [vmem:[#allocation8 + $0x24] sm:$0xf]
    %v319 = vld [vmem:[#allocation8 + $0x28] sm:$0xf]
    %v320 = vld [vmem:[#allocation8 + $0x2c] sm:$0xf]
    %v321 = vld [vmem:[#allocation8 + $0x30] sm:$0xf]
    %v322 = vld [vmem:[#allocation8 + $0x34] sm:$0xf]
    %v323 = vld [vmem:[#allocation8 + $0x38] sm:$0xf]
    %v324 = vld [vmem:[#allocation8 + $0x3c] sm:$0xf]
    %v325 = vld [vmem:[%s5] sm:$0x1]
    %v327 = vlaneseq
    %v328 = vshrl.u32 %v327, 7
    %v329 = vsub.s32 0, %v328
    %v330 = vrot.slane %v325, %v329
    %v348 = vunpack.c.l.b16 %v309
    %v349 = vunpack.c.l.b16 %v310
    %v350 = vunpack.c.l.b16 %v311
    %v351 = vunpack.c.l.b16 %v312
    %v352 = vunpack.c.l.b16 %v313
    %v353 = vunpack.c.l.b16 %v314
    %v354 = vunpack.c.l.b16 %v315
    %v355 = vunpack.c.l.b16 %v316
    %v356 = vunpack.c.l.b16 %v317
    %v357 = vunpack.c.l.b16 %v318
    %v358 = vunpack.c.l.b16 %v319
    %v359 = vunpack.c.l.b16 %v320
    %v360 = vunpack.c.l.b16 %v321
    %v361 = vunpack.c.l.b16 %v322
    %v362 = vunpack.c.l.b16 %v323
    %v363 = vunpack.c.l.b16 %v324
    %v364 = vpack.c.b16 %v349, %v348
    %v365 = vpack.c.b16 %v351, %v350
    %v366 = vpack.c.b16 %v353, %v352
    %v367 = vpack.c.b16 %v355, %v354
    %v368 = vpack.c.b16 %v357, %v356
    %v369 = vpack.c.b16 %v359, %v358
    %v370 = vpack.c.b16 %v361, %v360
    %v371 = vpack.c.b16 %v363, %v362
    %380 = vmatprep.subr.bf16.mxu0 0
    %381 = vmatpush1.bf16.msra.mxu0 %v371
    %382 = vmatprep.subr.bf16.mxu0 0
    %383 = vmatpush1.bf16.msra.mxu0 %v370
    %384 = vmatprep.subr.bf16.mxu0 0
    %385 = vmatpush1.bf16.msra.mxu0 %v369
    %386 = vmatprep.subr.bf16.mxu0 0
    %387 = vmatpush1.bf16.msra.mxu0 %v368
    %388 = vmatprep.subr.bf16.mxu0 0
    %389 = vmatpush1.bf16.msra.mxu0 %v367
    %390 = vmatprep.subr.bf16.mxu0 0
    %391 = vmatpush1.bf16.msra.mxu0 %v366
    %392 = vmatprep.subr.bf16.mxu0 0
    %393 = vmatpush1.bf16.msra.mxu0 %v365
    %394 = vmatprep.subr.bf16.mxu0 0
    %395 = vmatpush1.bf16.msra.mxu0 %v364
    %396 = vmatprep.subr.bf16.mxu0 0
    %397 = vmatpush2.bf16.msra.mxu0 0
    %398 = vmatprep.subr.bf16.mxu0 0
    %399 = vmatpush2.bf16.msra.mxu0 0
    %400 = vmatprep.subr.bf16.mxu0 0
    %401 = vmatpush2.bf16.msra.mxu0 0
    %402 = vmatprep.subr.bf16.mxu0 0
    %403 = vmatpush2.bf16.msra.mxu0 0
    %404 = vmatprep.subr.bf16.mxu0 0
    %405 = vmatpush2.bf16.msra.mxu0 0
    %406 = vmatprep.subr.bf16.mxu0 0
    %407 = vmatpush2.bf16.msra.mxu0 0
    %408 = vmatprep.subr.bf16.mxu0 0
    %409 = vmatpush2.bf16.msra.mxu0 0
    %410 = vmatprep.subr.bf16.mxu0 0
    %411 = vmatpush2.bf16.msra.mxu0 0
    %412 = vmatprep.mubr.bf16.mxu0 0
    %413 = vmatmul.mubr.bf16.gmra.mxu0 %v308
    %v414 = vpop.f32.mrf.mxu0
    %v415 = vadd.f32 %v330, %v414
    %v416 = vpop.f32.mrf.mxu0
    %v417 = vpop.f32.mrf.mxu0
    %v418 = vpop.f32.mrf.mxu0
    %419 = vdwg.mxu0
    %vm420 = vcmask 41984
    %421 = vst.msk [vmem:[#allocation10] sm:$0x3] %vm420, %v415
    %423 = vrot.lane.b32.xlu0 %v415, 122
    %v424 = vpop.permute.xlu0 %423
    %vm426 = vcmask 74752
    %427 = vst.msk [vmem:[#allocation11] sm:$0x3] %vm426, %v424
    // Predicated region
    $region42: #{_lambda_.1} parent=1 // pred_check
      _
    $region43: #{_lambda_.1} parent=1 // pred_check_branch
      %429 = sbr.rel (0) target = $region45
    $region44: #{_lambda_.1} parent=1 // pred_region
      %s431 = ssub.s32 32, 32
      %432 = vsyncadd [#allocation4], %s431
      %s434 = sshll.u32 [#allocation10], 4
      %s435 = int_to_ptr.vmem [resolvable:$true] %s434
      %437 = dma.vmem_to_hbm [thread:$0]  %s435, 32, %s6, [#allocation4]
    $region45: #{_lambda_.1} parent=1 // pred_fallthru
      _
    // Predicated region
    $region46: #{_lambda_.1} parent=1 // pred_check
      _
    $region47: #{_lambda_.1} parent=1 // pred_check_branch
      %439 = sbr.rel (0) target = $region49
    $region48: #{_lambda_.1} parent=1 // pred_region
      %s441 = ssub.s32 32, 32
      %442 = vsyncadd [#allocation12], %s441
      %s444 = sshll.u32 [#allocation11], 4
      %s445 = int_to_ptr.vmem [resolvable:$true] %s444
      %447 = dma.vmem_to_hbm [thread:$0]  %s445, 32, %s7, [#allocation12]
    $region49: #{_lambda_.1} parent=1 // pred_fallthru
      _
    // Predicated region
    $region50: #{_lambda_.1} parent=1 // pred_check
      _
    $region51: #{_lambda_.1} parent=1 // pred_check_branch
      %449 = sbr.rel (0) target = $region53
    $region52: #{_lambda_.1} parent=1 // pred_region
      %450 = dma.done [#allocation4], 32
    $region53: #{_lambda_.1} parent=1 // pred_fallthru
      _
    // Predicated region
    $region54: #{_lambda_.1} parent=1 // pred_check
      _
    $region55: #{_lambda_.1} parent=1 // pred_check_branch
      %452 = sbr.rel (0) target = $region57
    $region56: #{_lambda_.1} parent=1 // pred_region
      %453 = dma.done [#allocation12], 32
    $region57: #{_lambda_.1} parent=1 // pred_fallthru
      _
    %454 = vsyncpa [#allocation3], 1
    %455 = vsyncpa [#allocation6], 1
    %456 = vsyncpa [#allocation9], 1
    %457 = vsyncpa [#allocation4], 1
    %458 = vsyncpa [#allocation12], 1

</llo_original>
